<compile_context>
chip_gen: v6e
topology: v6e:2x2x1
jax: 0.10.0
libtpu: 0.0.40
codegen_flags: <defaults>
</compile_context>

<pallas_src>
import functools

import jax
import jax.numpy as jnp
from jax.experimental import pallas as pl
from jax.experimental.pallas import tpu as pltpu

BN_EPS = 1e-5


def _round8(n):
    return (n + 7) // 8 * 8


def _slab_layout(n_in, n_clusters, h1, n_out):
    """Row offsets of each parameter block inside the packed (rows, lanes) slab.

    Blocks stay row-stacked and lane-0 aligned (8-row aligned offsets): lane-offset
    weight views would force XLU realignment before the MXU, so we deliberately do
    NOT pack blocks side-by-side in lanes.
    """
    lanes = max(h1, 2 * n_out)
    o_wfx = 0                                   # (n_in, h1)        x-part of fused W0@W1
    o_wfy = o_wfx + _round8(n_in)               # (n_clusters, h1)  y-part of fused W0@W1
    o_wh = o_wfy + _round8(n_clusters)          # (h1, 2*n_out)     [Wm | Wv]
    o_vec = o_wh + _round8(h1)                  # 8 rows: bf, gamma, beta, [bm|bv]
    rows = o_vec + 8
    return (o_wfx, o_wfy, o_wh, o_vec), rows, lanes


def pack_params(params, n_in, n_clusters, h1, n_out):
    """Pack (and algebraically fuse) every parameter into one f32 slab (single DMA).

    Fusion (exact up to FP association): Wf = W0 @ W1, bf = b0 @ W1 + b1.
    """
    (o_wfx, o_wfy, o_wh, o_vec), rows, lanes = _slab_layout(n_in, n_clusters, h1, n_out)
    hp = jax.lax.Precision.HIGHEST
    wf = jnp.dot(params["w0"], params["w1"], precision=hp)        # (n_in+n_clusters, h1)
    bf = jnp.dot(params["b0"], params["w1"], precision=hp) + params["b1"]   # (1, h1)

    slab = jnp.zeros((rows, lanes), jnp.float32)
    slab = slab.at[o_wfx:o_wfx + n_in, :h1].set(wf[:n_in])
    slab = slab.at[o_wfy:o_wfy + n_clusters, :h1].set(wf[n_in:])
    wh = jnp.concatenate([params["wm"], params["wv"]], axis=1)    # (h1, 2*n_out)
    slab = slab.at[o_wh:o_wh + h1, :2 * n_out].set(wh)
    slab = slab.at[o_vec + 0, :h1].set(bf.reshape(-1))
    slab = slab.at[o_vec + 1, :h1].set(params["gamma"].reshape(-1))
    slab = slab.at[o_vec + 2, :h1].set(params["beta"].reshape(-1))
    bh = jnp.concatenate([params["bm"].reshape(-1), params["bv"].reshape(-1)])
    slab = slab.at[o_vec + 3, :2 * n_out].set(bh)
    return slab


def _softplus_torch(x):
    # torch.nn.Softplus(beta=1, threshold=20): x > 20 -> x, else log1p(exp(x)).
    # log1p is composed from exp/log/where only (Mosaic-safe); the x < -10 branch
    # avoids the log(1 + tiny) underflow (rel. err <= ~2e-5). exp/log run on the EUP.
    ex = jnp.exp(jnp.minimum(x, 20.0))
    lp = jnp.where(x < -10.0, ex, jnp.log(1.0 + ex))
    return jnp.where(x > 20.0, x, lp)


def _build_kernel(n_in, n_clusters, h1, n_out, n_samples, offs):
    o_wfx, o_wfy, o_wh, o_vec = offs

    def kernel(x_ref, y_ref, p_ref, eps_ref, out_ref):
        x = x_ref[...]                                            # (B, n_in)

        # static slab views (zero-cost static slices of the packed parameters)
        wfx = p_ref[o_wfx:o_wfx + n_in, :h1]
        wfy = p_ref[o_wfy:o_wfy + n_clusters, :h1]
        wh = p_ref[o_wh:o_wh + h1, :2 * n_out]
        vec = p_ref[o_vec:o_vec + 8, :]
        bf = vec[0:1, :h1]
        gamma = vec[1:2, :h1]
        beta = vec[2:3, :h1]
        bh = vec[3:4, :2 * n_out]

        # y is batch-invariant: project it ONCE as a (1, h1) row and fold it into
        # the (already fused) bias instead of broadcasting it over the batch.
        y_bias = jnp.dot(y_ref[...], wfy, preferred_element_type=jnp.float32) + bf  # (1, h1)

        # fused Linear0+Linear1 (W0 @ W1 folded at pack time) -> one batch matmul
        h = jnp.dot(x, wfx, preferred_element_type=jnp.float32) + y_bias            # (B, h1)

        # BatchNorm1d (training mode): batch mean, biased variance, eps=1e-5; then ReLU
        mu = jnp.mean(h, axis=0, keepdims=True)
        d = h - mu
        var = jnp.mean(d * d, axis=0, keepdims=True)
        q = jnp.maximum(d * jax.lax.rsqrt(var + BN_EPS) * gamma + beta, 0.0)

        # fused mean/var heads: one (h1, 2*n_out) matmul
        heads = jnp.dot(q, wh, preferred_element_type=jnp.float32) + bh             # (B, 2*n_out)

        # Lane-masked in-place head transform: lanes [0, n_out) keep the mean head,
        # lanes [n_out, 2*n_out) become sqrt(softplus(var head)). VPU select;
        # exp/log/sqrt ride the otherwise-idle EUP slot.
        lane = jax.lax.broadcasted_iota(jnp.int32, heads.shape, 1)
        first = jnp.where(lane < n_out, heads, jnp.sqrt(_softplus_torch(heads)))    # [q_m | q_std]

        q_m = first[:, :n_out]
        q_std = first[:, n_out:2 * n_out]
        if n_samples > 1:
            mrep = jnp.concatenate([q_m] * n_samples, axis=1)                       # (B, S*n_out)
            srep = jnp.concatenate([q_std] * n_samples, axis=1)
        else:
            mrep, srep = q_m, q_std
        # Normal(q_m, std).rsample(): z = q_m + std * eps, eps ~ N(0, 1), lane-contiguous
        z_flat = mrep + srep * eps_ref[...]                                         # (B, S*n_out)

        # single lane-contiguous store: [ q_m | q_std | z_0 | ... | z_{S-1} ]
        out_ref[...] = jnp.concatenate([first, z_flat], axis=1)

    return kernel


def qz_given_xy_forward(x, y, packed_params, eps, *, n_in, n_clusters, n_hidden, n_out):
    """Mirrors qz_given_xy_encoder.forward: returns ((q_m, q_std), z_mean, z)."""
    B = x.shape[0]
    S = eps.shape[0]
    h1 = n_hidden[-1]
    offs, rows, lanes = _slab_layout(n_in, n_clusters, h1, n_out)
    assert packed_params.shape == (rows, lanes)

    kernel = _build_kernel(n_in, n_clusters, h1, n_out, S, offs)
    vmem = pl.BlockSpec(memory_space=pltpu.MemorySpace.VMEM)
    out_w = (2 + S) * n_out

    # eps enters lane-contiguous: row b holds [eps_0[b] | eps_1[b] | ...].
    # TODO(synk): eps could be generated on-chip (pltpu.prng_seed + stateful_normal)
    # to drop this DMA, but that changes the RNG stream vs jax.random, so it stays
    # an explicit input here for deterministic parity with the reference.
    eps_flat = eps.transpose(1, 0, 2).reshape(B, S * n_out).astype(jnp.float32)

    cost = pl.CostEstimate(
        flops=2 * (B * n_in * h1 + n_clusters * h1 + B * h1 * 2 * n_out),
        transcendentals=3 * B * 2 * n_out,
        bytes_accessed=4 * (x.size + y.size + packed_params.size + eps_flat.size + B * out_w),
    )

    out = pl.pallas_call(
        kernel,
        out_shape=jax.ShapeDtypeStruct((B, out_w), jnp.float32),
        in_specs=[vmem, vmem, vmem, vmem],
        out_specs=vmem,
        cost_estimate=cost,
    )(
        x.astype(jnp.float32),
        y.reshape(1, n_clusters).astype(jnp.float32),
        packed_params,
        eps_flat,
    )

    q_m = out[:, :n_out]
    q_std = out[:, n_out:2 * n_out]
    z = out[:, 2 * n_out:].reshape(B, S, n_out).transpose(1, 0, 2)
    # TODO(synk): torch.distributions.Normal object has no Pallas equivalent; we
    # return its defining parameters (mean, std) instead of a distribution object.
    z_mean = q_m
    return (q_m, q_std), z_mean, z


def _reference(x, y, params, eps):
    """Pure-JAX reference of the PyTorch forward (unfused; validates the pack-time fusion)."""
    B = x.shape[0]
    hp = jax.lax.Precision.HIGHEST
    cat = jnp.concatenate([x, jnp.broadcast_to(y[None, :], (B, y.shape[0]))], axis=1)
    h = jnp.dot(cat, params["w0"], precision=hp) + params["b0"]
    h = jnp.dot(h, params["w1"], precision=hp) + params["b1"]
    mu = h.mean(0, keepdims=True)
    var = ((h - mu) ** 2).mean(0, keepdims=True)
    q = jnp.maximum((h - mu) / jnp.sqrt(var + BN_EPS) * params["gamma"] + params["beta"], 0.0)
    q_m = jnp.dot(q, params["wm"], precision=hp) + params["bm"]
    q_v = jax.nn.softplus(jnp.dot(q, params["wv"], precision=hp) + params["bv"])
    std = jnp.sqrt(q_v)
    z = q_m[None] + std[None] * eps
    return q_m, std, z


if __name__ == "__main__":
    # module config (small, consistent with the forward pass)
    n_in, n_clusters = 16, 4
    n_hidden = (32, 32)
    n_out = 8
    n_iw_samples, n_mc_samples = 2, 1
    latent_size = n_out
    B = 8
    S = n_iw_samples * n_mc_samples

    key = jax.random.PRNGKey(0)
    ks = jax.random.split(key, 12)

    def init(k, shape, scale=0.1):
        return (scale * jax.random.normal(k, shape)).astype(jnp.float32)

    params = {
        "w0": init(ks[0], (n_in + n_clusters, n_hidden[0])),
        "b0": init(ks[1], (1, n_hidden[0])),
        "w1": init(ks[2], (n_hidden[0], n_hidden[1])),
        "b1": init(ks[3], (1, n_hidden[1])),
        "gamma": jnp.ones((1, n_hidden[1]), jnp.float32),   # BatchNorm1d weight init
        "beta": jnp.zeros((1, n_hidden[1]), jnp.float32),   # BatchNorm1d bias init
        "wm": init(ks[4], (n_hidden[1], n_out)),
        "bm": init(ks[5], (1, n_out)),
        "wv": init(ks[6], (n_hidden[1], n_out)),
        "bv": init(ks[7], (1, n_out)),
    }

    x = jax.random.normal(ks[8], (B, n_in), dtype=jnp.float32)
    y = jax.random.normal(ks[9], (n_clusters,), dtype=jnp.float32)
    eps = jax.random.normal(ks[10], (S, B, n_out), dtype=jnp.float32)

    # One-time parameter packing + Linear-Linear fusion (outside the hot path):
    # 10 tensors -> 1 small (64, 32) f32 slab DMA.
    packed = pack_params(params, n_in, n_clusters, n_hidden[-1], n_out)
    packed = jax.block_until_ready(packed)

    fwd = jax.jit(functools.partial(
        qz_given_xy_forward,
        n_in=n_in, n_clusters=n_clusters, n_hidden=n_hidden, n_out=n_out))

    (q_m, q_std), z_mean, z = fwd(x, y, packed, eps)
    jax.block_until_ready((q_m, q_std, z_mean, z))

    assert q_m.shape == (B, n_out)
    assert q_std.shape == (B, n_out)
    assert z_mean.shape == (B, n_out)
    assert z.shape == (S, B, n_out)

    # numerical check against a pure-JAX (unfused) reference; tolerance absorbs the
    # pack-time W0@W1 fusion's FP re-association and MXU-vs-XLA matmul differences.
    r_m, r_std, r_z = _reference(x, y, params, eps)
    assert bool(jnp.all(jnp.isfinite(q_m)) & jnp.all(jnp.isfinite(q_std)) & jnp.all(jnp.isfinite(z)))
    assert jnp.allclose(q_m, r_m, rtol=5e-2, atol=5e-2)
    assert jnp.allclose(q_std, r_std, rtol=5e-2, atol=5e-2)
    assert jnp.allclose(z, r_z, rtol=5e-2, atol=5e-2)

    print("KERNEL_OK")
</pallas_src>

<mosaic_0001>
module attributes {stable_mosaic.version = 11 : i64} {
  func.func @kernel(%arg0: memref<8x16xf32, #tpu.memory_space<vmem>>, %arg1: memref<1x4xf32, #tpu.memory_space<vmem>>, %arg2: memref<64x32xf32, #tpu.memory_space<vmem>>, %arg3: memref<8x16xf32, #tpu.memory_space<vmem>>, %arg4: memref<8x32xf32, #tpu.memory_space<vmem>>) attributes {dimension_semantics = [], scalar_prefetch = 0 : i64, scratch_operands = 0 : i64, tpu.core_type = #tpu.core_type<tc>} {
    %c0 = arith.constant 0 : index
    %c0_0 = arith.constant 0 : index
    %0 = vector.load %arg0[%c0, %c0_0] : memref<8x16xf32, #tpu.memory_space<vmem>>, vector<8x16xf32>
    %c0_1 = arith.constant 0 : index
    %c0_2 = arith.constant 0 : index
    %1 = vector.load %arg2[%c0_1, %c0_2] : memref<64x32xf32, #tpu.memory_space<vmem>>, vector<16x32xf32>
    %c16 = arith.constant 16 : index
    %c0_3 = arith.constant 0 : index
    %2 = vector.load %arg2[%c16, %c0_3] : memref<64x32xf32, #tpu.memory_space<vmem>>, vector<4x32xf32>
    %c24 = arith.constant 24 : index
    %c0_4 = arith.constant 0 : index
    %3 = vector.load %arg2[%c24, %c0_4] : memref<64x32xf32, #tpu.memory_space<vmem>>, vector<32x16xf32>
    %c56 = arith.constant 56 : index
    %c0_5 = arith.constant 0 : index
    %4 = vector.load %arg2[%c56, %c0_5] : memref<64x32xf32, #tpu.memory_space<vmem>>, vector<8x32xf32>
    %5 = vector.extract_strided_slice %4 {offsets = [0, 0], sizes = [1, 32], strides = [1, 1]} : vector<8x32xf32> to vector<1x32xf32>
    %6 = vector.extract_strided_slice %4 {offsets = [1, 0], sizes = [1, 32], strides = [1, 1]} : vector<8x32xf32> to vector<1x32xf32>
    %7 = vector.extract_strided_slice %4 {offsets = [2, 0], sizes = [1, 32], strides = [1, 1]} : vector<8x32xf32> to vector<1x32xf32>
    %8 = vector.extract_strided_slice %4 {offsets = [3, 0], sizes = [1, 16], strides = [1, 1]} : vector<8x32xf32> to vector<1x16xf32>
    %c0_6 = arith.constant 0 : index
    %c0_7 = arith.constant 0 : index
    %9 = vector.load %arg1[%c0_6, %c0_7] : memref<1x4xf32, #tpu.memory_space<vmem>>, vector<1x4xf32>
    %cst = arith.constant dense<0.000000e+00> : vector<1x32xf32>
    %10 = tpu.matmul %9, %2, %cst {dimension_numbers = #tpu.dot_dimension_numbers<[1], [0], [0], [1], [0, 0, 1, 1], [], []>} : vector<1x4xf32>, vector<4x32xf32>, vector<1x32xf32> -> vector<1x32xf32>
    %11 = arith.addf %10, %5 : vector<1x32xf32>
    %cst_8 = arith.constant dense<0.000000e+00> : vector<8x32xf32>
    %12 = tpu.matmul %0, %1, %cst_8 {dimension_numbers = #tpu.dot_dimension_numbers<[1], [0], [0], [1], [0, 0, 1, 1], [], []>} : vector<8x16xf32>, vector<16x32xf32>, vector<8x32xf32> -> vector<8x32xf32>
    %13 = vector.broadcast %11 : vector<1x32xf32> to vector<8x32xf32>
    %14 = arith.addf %12, %13 : vector<8x32xf32>
    %cst_9 = arith.constant dense<0.000000e+00> : vector<32xf32>
    %15 = vector.multi_reduction <add>, %14, %cst_9 [0] : vector<8x32xf32> to vector<32xf32>
    %16 = vector.shape_cast %15 : vector<32xf32> to vector<1x32xf32>
    %cst_10 = arith.constant 8.000000e+00 : f32
    %17 = vector.broadcast %cst_10 : f32 to vector<1x32xf32>
    %18 = arith.divf %16, %17 : vector<1x32xf32>
    %19 = vector.broadcast %18 : vector<1x32xf32> to vector<8x32xf32>
    %20 = arith.subf %14, %19 : vector<8x32xf32>
    %21 = arith.mulf %20, %20 : vector<8x32xf32>
    %cst_11 = arith.constant dense<0.000000e+00> : vector<32xf32>
    %22 = vector.multi_reduction <add>, %21, %cst_11 [0] : vector<8x32xf32> to vector<32xf32>
    %23 = vector.shape_cast %22 : vector<32xf32> to vector<1x32xf32>
    %cst_12 = arith.constant 8.000000e+00 : f32
    %24 = vector.broadcast %cst_12 : f32 to vector<1x32xf32>
    %25 = arith.divf %23, %24 : vector<1x32xf32>
    %cst_13 = arith.constant 9.99999974E-6 : f32
    %26 = vector.broadcast %cst_13 : f32 to vector<1x32xf32>
    %27 = arith.addf %25, %26 : vector<1x32xf32>
    %28 = math.rsqrt %27 : vector<1x32xf32>
    %29 = vector.broadcast %28 : vector<1x32xf32> to vector<8x32xf32>
    %30 = arith.mulf %20, %29 : vector<8x32xf32>
    %31 = vector.broadcast %6 : vector<1x32xf32> to vector<8x32xf32>
    %32 = arith.mulf %30, %31 : vector<8x32xf32>
    %33 = vector.broadcast %7 : vector<1x32xf32> to vector<8x32xf32>
    %34 = arith.addf %32, %33 : vector<8x32xf32>
    %cst_14 = arith.constant 0.000000e+00 : f32
    %35 = vector.broadcast %cst_14 : f32 to vector<8x32xf32>
    %36 = arith.maximumf %34, %35 : vector<8x32xf32>
    %cst_15 = arith.constant dense<0.000000e+00> : vector<8x16xf32>
    %37 = tpu.matmul %36, %3, %cst_15 {dimension_numbers = #tpu.dot_dimension_numbers<[1], [0], [0], [1], [0, 0, 1, 1], [], []>} : vector<8x32xf32>, vector<32x16xf32>, vector<8x16xf32> -> vector<8x16xf32>
    %38 = vector.broadcast %8 : vector<1x16xf32> to vector<8x16xf32>
    %39 = arith.addf %37, %38 : vector<8x16xf32>
    %40 = tpu.iota {dimensions = array<i32: 1>} : vector<8x16xi32>
    %c8_i32 = arith.constant 8 : i32
    %41 = vector.broadcast %c8_i32 : i32 to vector<8x16xi32>
    %42 = arith.cmpi slt, %40, %41 : vector<8x16xi32>
    %cst_16 = arith.constant 2.000000e+01 : f32
    %43 = vector.broadcast %cst_16 : f32 to vector<8x16xf32>
    %44 = arith.minimumf %39, %43 : vector<8x16xf32>
    %45 = math.exp %44 : vector<8x16xf32>
    %cst_17 = arith.constant -1.000000e+01 : f32
    %46 = vector.broadcast %cst_17 : f32 to vector<8x16xf32>
    %47 = arith.cmpf olt, %39, %46 : vector<8x16xf32>
    %cst_18 = arith.constant 1.000000e+00 : f32
    %48 = vector.broadcast %cst_18 : f32 to vector<8x16xf32>
    %49 = arith.addf %48, %45 : vector<8x16xf32>
    %50 = math.log %49 : vector<8x16xf32>
    %51 = arith.select %47, %45, %50 : vector<8x16xi1>, vector<8x16xf32>
    %cst_19 = arith.constant 2.000000e+01 : f32
    %52 = vector.broadcast %cst_19 : f32 to vector<8x16xf32>
    %53 = arith.cmpf ogt, %39, %52 : vector<8x16xf32>
    %54 = arith.select %53, %39, %51 : vector<8x16xi1>, vector<8x16xf32>
    %55 = math.sqrt %54 : vector<8x16xf32>
    %56 = arith.select %42, %39, %55 : vector<8x16xi1>, vector<8x16xf32>
    %57 = vector.extract_strided_slice %56 {offsets = [0, 0], sizes = [8, 8], strides = [1, 1]} : vector<8x16xf32> to vector<8x8xf32>
    %58 = vector.extract_strided_slice %56 {offsets = [0, 8], sizes = [8, 8], strides = [1, 1]} : vector<8x16xf32> to vector<8x8xf32>
    %59 = tpu.concatenate %57, %57 in 1 : vector<8x8xf32>, vector<8x8xf32> -> vector<8x16xf32>
    %60 = tpu.concatenate %58, %58 in 1 : vector<8x8xf32>, vector<8x8xf32> -> vector<8x16xf32>
    %c0_20 = arith.constant 0 : index
    %c0_21 = arith.constant 0 : index
    %61 = vector.load %arg3[%c0_20, %c0_21] : memref<8x16xf32, #tpu.memory_space<vmem>>, vector<8x16xf32>
    %62 = arith.mulf %60, %61 : vector<8x16xf32>
    %63 = arith.addf %59, %62 : vector<8x16xf32>
    %64 = tpu.concatenate %56, %63 in 1 : vector<8x16xf32>, vector<8x16xf32> -> vector<8x32xf32>
    %c0_22 = arith.constant 0 : index
    %c0_23 = arith.constant 0 : index
    %65 = vector.load %arg4[%c0_22, %c0_23] : memref<8x32xf32, #tpu.memory_space<vmem>>, vector<8x32xf32>
    tpu.vector_store %arg4[%c0_22, %c0_23], %64 {strides = array<i32>} : memref<8x32xf32, #tpu.memory_space<vmem>>, vector<8x32xf32>,
    return
  }
}

</mosaic_0001>

<llo_original>
// kernel: qz_given_xy_forward.1
$region0: #{qz_given_xy_forward.1}
  #allocation0 [shape = 'u32[]', space=smem, size = 0x4, offset = 0x4, fixed_abs, tag = 'smem constant byte address 0x4 - core index']
  #allocation1 [shape = 'u32[144,128]{1,0:T(1,128)}', space=vmem, size = 0x12000, scoped, tag = 'internal scratch']
  %s0 = inlined_call_operand.vmem [shape: f32[8,16], index: 0, kind: input, shape index: {}]
  %s1 = inlined_call_operand.vmem [shape: f32[1,4], index: 1, kind: input, shape index: {}]
  %s2 = inlined_call_operand.vmem [shape: f32[64,32], index: 2, kind: input, shape index: {}]
  %s3 = inlined_call_operand.vmem [shape: f32[8,16], index: 3, kind: input, shape index: {}]
  %s4 = inlined_call_operand.vmem [shape: f32[8,32], index: 4, kind: output, shape index: {}]
  %s5 = sld [smem:[#allocation0]]
  $region26: #{qz_given_xy_forward.1} parent=0
    _
  %s7 = ssub.s32 1, %s5
  %s8 = scalar_select 0, %s7, %s5
  // Predicated region
  $region2: #{qz_given_xy_forward.1} parent=0 // pred_check
    _
  $region3: #{qz_given_xy_forward.1} parent=0 // pred_check_branch
    %10 = sbr.rel (0) target = $region5
  $region4: #{qz_given_xy_forward.1} parent=0 // pred_region
    _
  $region5: #{qz_given_xy_forward.1} parent=0 // pred_fallthru
    _
  // Predicated region
  $region6: #{qz_given_xy_forward.1} parent=0 // pred_check
    _
  $region7: #{qz_given_xy_forward.1} parent=0 // pred_check_branch
    %12 = sbr.rel (0) target = $region9
  $region8: #{qz_given_xy_forward.1} parent=0 // pred_region
    _
  $region9: #{qz_given_xy_forward.1} parent=0 // pred_fallthru
    _
  // Predicated region
  $region10: #{qz_given_xy_forward.1} parent=0 // pred_check
    _
  $region11: #{qz_given_xy_forward.1} parent=0 // pred_check_branch
    %14 = sbr.rel (0) target = $region13
  $region12: #{qz_given_xy_forward.1} parent=0 // pred_region
    _
  $region13: #{qz_given_xy_forward.1} parent=0 // pred_fallthru
    _
  // Predicated region
  $region14: #{qz_given_xy_forward.1} parent=0 // pred_check
    _
  $region15: #{qz_given_xy_forward.1} parent=0 // pred_check_branch
    %16 = sbr.rel (0) target = $region17
  $region16: #{qz_given_xy_forward.1} parent=0 // pred_region
    _
  $region17: #{qz_given_xy_forward.1} parent=0 // pred_fallthru
    _
  %v17 = vld [vmem:[%s0] sm:$0xff]
  %v18 = vld [vmem:[%s2] sm:$0xff]
  %v19 = vld [vmem:[%s2 + $0x8] sm:$0xff]
  %v20 = vld [vmem:[%s2 + $0x10] sm:$0xf]
  %v21 = vld [vmem:[%s2 + $0x18] sm:$0xff]
  %v22 = vld [vmem:[%s2 + $0x20] sm:$0xff]
  %v23 = vld [vmem:[%s2 + $0x28] sm:$0xff]
  %v24 = vld [vmem:[%s2 + $0x30] sm:$0xff]
  %v25 = vld [vmem:[%s2 + $0x38] sm:$0xff]
  %v26 = vld [vmem:[%s1] sm:$0x1]
  %vm27 = vcmask 31744
  %v29 = vsel %vm27, %v26, 0
  %vm31 = vcmask 1043456
  %v33 = vsel %vm31, %v20, 0
  %35 = vmatprep.subr.mxu0 0.0
  %36 = vmatpush1.msra.mxu0 0.0
  %37 = vmatprep.subr.mxu0 0.0
  %38 = vmatpush1.msra.mxu0 0.0
  %39 = vmatprep.subr.mxu0 0.0
  %40 = vmatpush1.msra.mxu0 0.0
  %41 = vmatprep.subr.mxu0 0.0
  %42 = vmatpush1.msra.mxu0 0.0
  %43 = vmatprep.subr.mxu0 0.0
  %44 = vmatpush1.msra.mxu0 0.0
  %45 = vmatprep.subr.mxu0 0.0
  %46 = vmatpush1.msra.mxu0 0.0
  %47 = vmatprep.subr.mxu0 0.0
  %48 = vmatpush1.msra.mxu0 0.0
  %49 = vmatprep.subr.mxu0 0.0
  %50 = vmatpush1.msra.mxu0 0.0
  %51 = vmatprep.subr.mxu0 0.0
  %52 = vmatpush1.msra.mxu0 0.0
  %53 = vmatprep.subr.mxu0 0.0
  %54 = vmatpush1.msra.mxu0 0.0
  %55 = vmatprep.subr.mxu0 0.0
  %56 = vmatpush1.msra.mxu0 0.0
  %57 = vmatprep.subr.mxu0 0.0
  %58 = vmatpush1.msra.mxu0 0.0
  %59 = vmatprep.subr.mxu0 0.0
  %60 = vmatpush1.msra.mxu0 0.0
  %61 = vmatprep.subr.mxu0 0.0
  %62 = vmatpush1.msra.mxu0 0.0
  %63 = vmatprep.subr.mxu0 0.0
  %64 = vmatpush1.msra.mxu0 0.0
  %65 = vmatprep.subr.mxu0 0.0
  %66 = vmatpush1.msra.mxu0 %v33
  %67 = vmatprep.subr.mxu0 0.0
  %68 = vmatpush2.msra.mxu0 0.0
  %69 = vmatprep.subr.mxu0 0.0
  %70 = vmatpush2.msra.mxu0 0.0
  %71 = vmatprep.subr.mxu0 0.0
  %72 = vmatpush2.msra.mxu0 0.0
  %73 = vmatprep.subr.mxu0 0.0
  %74 = vmatpush2.msra.mxu0 0.0
  %75 = vmatprep.subr.mxu0 0.0
  %76 = vmatpush2.msra.mxu0 0.0
  %77 = vmatprep.subr.mxu0 0.0
  %78 = vmatpush2.msra.mxu0 0.0
  %79 = vmatprep.subr.mxu0 0.0
  %80 = vmatpush2.msra.mxu0 0.0
  %81 = vmatprep.subr.mxu0 0.0
  %82 = vmatpush2.msra.mxu0 0.0
  %83 = vmatprep.subr.mxu0 0.0
  %84 = vmatpush2.msra.mxu0 0.0
  %85 = vmatprep.subr.mxu0 0.0
  %86 = vmatpush2.msra.mxu0 0.0
  %87 = vmatprep.subr.mxu0 0.0
  %88 = vmatpush2.msra.mxu0 0.0
  %89 = vmatprep.subr.mxu0 0.0
  %90 = vmatpush2.msra.mxu0 0.0
  %91 = vmatprep.subr.mxu0 0.0
  %92 = vmatpush2.msra.mxu0 0.0
  %93 = vmatprep.subr.mxu0 0.0
  %94 = vmatpush2.msra.mxu0 0.0
  %95 = vmatprep.subr.mxu0 0.0
  %96 = vmatpush2.msra.mxu0 0.0
  %97 = vmatprep.subr.mxu0 0.0
  %98 = vmatpush2.msra.mxu0 0.0
  %99 = vmatprep.mubr.f32.mxu0 0.0
  %100 = vmatmul.mubr.f32.gmra.mxu0 %v29
  %v101 = vpop.f32.mrf.mxu0
  %v102 = vadd.f32 %v25, %v101
  %v103 = vpop.f32.mrf.mxu0
  %104 = vdwg.mxu0
  %v105 = vlaneseq
  %v106 = vshrl.u32 %v105, 7
  %v107 = vsub.s32 0, %v106
  %v108 = vrot.slane %v102, %v107
  %vm109 = vcmask 130048
  %v111 = vsel %vm109, %v17, 0
  %113 = vmatprep.subr.mxu0 0.0
  %114 = vmatpush1.msra.mxu0 0.0
  %115 = vmatprep.subr.mxu0 0.0
  %116 = vmatpush1.msra.mxu0 0.0
  %117 = vmatprep.subr.mxu0 0.0
  %118 = vmatpush1.msra.mxu0 0.0
  %119 = vmatprep.subr.mxu0 0.0
  %120 = vmatpush1.msra.mxu0 0.0
  %121 = vmatprep.subr.mxu0 0.0
  %122 = vmatpush1.msra.mxu0 0.0
  %123 = vmatprep.subr.mxu0 0.0
  %124 = vmatpush1.msra.mxu0 0.0
  %125 = vmatprep.subr.mxu0 0.0
  %126 = vmatpush1.msra.mxu0 0.0
  %127 = vmatprep.subr.mxu0 0.0
  %128 = vmatpush1.msra.mxu0 0.0
  %129 = vmatprep.subr.mxu0 0.0
  %130 = vmatpush1.msra.mxu0 0.0
  %131 = vmatprep.subr.mxu0 0.0
  %132 = vmatpush1.msra.mxu0 0.0
  %133 = vmatprep.subr.mxu0 0.0
  %134 = vmatpush1.msra.mxu0 0.0
  %135 = vmatprep.subr.mxu0 0.0
  %136 = vmatpush1.msra.mxu0 0.0
  %137 = vmatprep.subr.mxu0 0.0
  %138 = vmatpush1.msra.mxu0 0.0
  %139 = vmatprep.subr.mxu0 0.0
  %140 = vmatpush1.msra.mxu0 0.0
  %141 = vmatprep.subr.mxu0 0.0
  %142 = vmatpush1.msra.mxu0 %v19
  %143 = vmatprep.subr.mxu0 0.0
  %144 = vmatpush1.msra.mxu0 %v18
  %145 = vmatprep.subr.mxu0 0.0
  %146 = vmatpush2.msra.mxu0 0.0
  %147 = vmatprep.subr.mxu0 0.0
  %148 = vmatpush2.msra.mxu0 0.0
  %149 = vmatprep.subr.mxu0 0.0
  %150 = vmatpush2.msra.mxu0 0.0
  %151 = vmatprep.subr.mxu0 0.0
  %152 = vmatpush2.msra.mxu0 0.0
  %153 = vmatprep.subr.mxu0 0.0
  %154 = vmatpush2.msra.mxu0 0.0
  %155 = vmatprep.subr.mxu0 0.0
  %156 = vmatpush2.msra.mxu0 0.0
  %157 = vmatprep.subr.mxu0 0.0
  %158 = vmatpush2.msra.mxu0 0.0
  %159 = vmatprep.subr.mxu0 0.0
  %160 = vmatpush2.msra.mxu0 0.0
  %161 = vmatprep.subr.mxu0 0.0
  %162 = vmatpush2.msra.mxu0 0.0
  %163 = vmatprep.subr.mxu0 0.0
  %164 = vmatpush2.msra.mxu0 0.0
  %165 = vmatprep.subr.mxu0 0.0
  %166 = vmatpush2.msra.mxu0 0.0
  %167 = vmatprep.subr.mxu0 0.0
  %168 = vmatpush2.msra.mxu0 0.0
  %169 = vmatprep.subr.mxu0 0.0
  %170 = vmatpush2.msra.mxu0 0.0
  %171 = vmatprep.subr.mxu0 0.0
  %172 = vmatpush2.msra.mxu0 0.0
  %173 = vmatprep.subr.mxu0 0.0
  %174 = vmatpush2.msra.mxu0 0.0
  %175 = vmatprep.subr.mxu0 0.0
  %176 = vmatpush2.msra.mxu0 0.0
  %177 = vmatprep.mubr.f32.mxu0 0.0
  %178 = vmatmul.mubr.f32.gmra.mxu0 %v111
  %v179 = vpop.f32.mrf.mxu0
  %v180 = vadd.f32 %v108, %v179
  %v181 = vpop.f32.mrf.mxu0
  %182 = vdwg.mxu0
  %vm183 = vcmask 261120
  %v184 = vsel %vm183, %v180, 0.0
  %v185 = vrot.slane %v184, 4
  %v186 = vadd.f32 %v184, %v185
  %v187 = vrot.slane %v186, 2
  %v188 = vadd.f32 %v186, %v187
  %v189 = vrot.slane %v188, 1
  %v190 = vadd.f32 %v188, %v189
  %v191 = vrcp.pop 8.0
  %v192 = vmul.f32 %v190, %v191
  %v193 = vsub.f32 %v180, %v192
  %v194 = vmul.f32 %v193, %v193
  %v195 = vsel %vm183, %v194, 0.0
  %v196 = vrot.slane %v195, 4
  %v197 = vadd.f32 %v195, %v196
  %v198 = vrot.slane %v197, 2
  %v199 = vadd.f32 %v197, %v198
  %v200 = vrot.slane %v199, 1
  %v201 = vadd.f32 %v199, %v200
  %v202 = vmul.f32 %v201, %v191
  %v203 = vadd.f32 %v202, 1e-05
  %v204 = vrsqrt.pop %v203
  %v205 = vmul.f32 %v193, %v204
  %v206 = vlaneseq
  %v207 = vshrl.u32 %v206, 7
  %v208 = vsub.s32 1, %v207
  %v209 = vrot.slane %v25, %v208
  %v210 = vmul.f32 %v205, %v209
  %v211 = vlaneseq
  %v212 = vshrl.u32 %v211, 7
  %v213 = vsub.s32 2, %v212
  %v214 = vrot.slane %v25, %v213
  %v215 = vadd.f32 %v210, %v214
  %v216 = vmax.f32 %v215, 0.0
  %v217 = vlaneseq
  %v218 = vshrl.u32 %v217, 7
  %v219 = vsub.s32 3, %v218
  %v220 = vrot.slane %v25, %v219
  %v222 = vsel %vm183, %v216, 0
  %224 = vmatprep.subr.mxu0 0.0
  %225 = vmatpush1.msra.mxu0 0.0
  %226 = vmatprep.subr.mxu0 0.0
  %227 = vmatpush1.msra.mxu0 0.0
  %228 = vmatprep.subr.mxu0 0.0
  %229 = vmatpush1.msra.mxu0 0.0
  %230 = vmatprep.subr.mxu0 0.0
  %231 = vmatpush1.msra.mxu0 0.0
  %232 = vmatprep.subr.mxu0 0.0
  %233 = vmatpush1.msra.mxu0 0.0
  %234 = vmatprep.subr.mxu0 0.0
  %235 = vmatpush1.msra.mxu0 0.0
  %236 = vmatprep.subr.mxu0 0.0
  %237 = vmatpush1.msra.mxu0 0.0
  %238 = vmatprep.subr.mxu0 0.0
  %239 = vmatpush1.msra.mxu0 0.0
  %240 = vmatprep.subr.mxu0 0.0
  %241 = vmatpush1.msra.mxu0 0.0
  %242 = vmatprep.subr.mxu0 0.0
  %243 = vmatpush1.msra.mxu0 0.0
  %244 = vmatprep.subr.mxu0 0.0
  %245 = vmatpush1.msra.mxu0 0.0
  %246 = vmatprep.subr.mxu0 0.0
  %247 = vmatpush1.msra.mxu0 0.0
  %248 = vmatprep.subr.mxu0 0.0
  %249 = vmatpush1.msra.mxu0 %v24
  %250 = vmatprep.subr.mxu0 0.0
  %251 = vmatpush1.msra.mxu0 %v23
  %252 = vmatprep.subr.mxu0 0.0
  %253 = vmatpush1.msra.mxu0 %v22
  %254 = vmatprep.subr.mxu0 0.0
  %255 = vmatpush1.msra.mxu0 %v21
  %256 = vmatprep.subr.mxu0 0.0
  %257 = vmatpush2.msra.mxu0 0.0
  %258 = vmatprep.subr.mxu0 0.0
  %259 = vmatpush2.msra.mxu0 0.0
  %260 = vmatprep.subr.mxu0 0.0
  %261 = vmatpush2.msra.mxu0 0.0
  %262 = vmatprep.subr.mxu0 0.0
  %263 = vmatpush2.msra.mxu0 0.0
  %264 = vmatprep.subr.mxu0 0.0
  %265 = vmatpush2.msra.mxu0 0.0
  %266 = vmatprep.subr.mxu0 0.0
  %267 = vmatpush2.msra.mxu0 0.0
  %268 = vmatprep.subr.mxu0 0.0
  %269 = vmatpush2.msra.mxu0 0.0
  %270 = vmatprep.subr.mxu0 0.0
  %271 = vmatpush2.msra.mxu0 0.0
  %272 = vmatprep.subr.mxu0 0.0
  %273 = vmatpush2.msra.mxu0 0.0
  %274 = vmatprep.subr.mxu0 0.0
  %275 = vmatpush2.msra.mxu0 0.0
  %276 = vmatprep.subr.mxu0 0.0
  %277 = vmatpush2.msra.mxu0 0.0
  %278 = vmatprep.subr.mxu0 0.0
  %279 = vmatpush2.msra.mxu0 0.0
  %280 = vmatprep.subr.mxu0 0.0
  %281 = vmatpush2.msra.mxu0 0.0
  %282 = vmatprep.subr.mxu0 0.0
  %283 = vmatpush2.msra.mxu0 0.0
  %284 = vmatprep.subr.mxu0 0.0
  %285 = vmatpush2.msra.mxu0 0.0
  %286 = vmatprep.subr.mxu0 0.0
  %287 = vmatpush2.msra.mxu0 0.0
  %288 = vmatprep.mubr.f32.mxu0 0.0
  %289 = vmatmul.mubr.f32.gmra.mxu0 %v222
  %v290 = vpop.f32.mrf.mxu0
  %v291 = vadd.f32 %v220, %v290
  %v292 = vpop.f32.mrf.mxu0
  %293 = vdwg.mxu0
  %v294 = vlaneseq
  %v295 = vand.u32 %v294, 127
  %vm296 = vcmp.lt.s32.totalorder %v295, 8
  %v297 = vmin.f32 %v291, 20.0
  %v298 = vmul.f32 %v297, 1.442695
  %v299 = vpow.pop %v298
  %vm300 = vcmp.lt.f32.partialorder %v291, -10.0
  %v301 = vadd.f32 %v299, 1.0
  %v302 = vlog2.pop %v301
  %v303 = vmul.f32 %v302, 0.6931472
  %v304 = vsel %vm300, %v299, %v303
  %vm305 = vcmp.gt.f32.partialorder %v291, 20.0
  %v306 = vsel %vm305, %v291, %v304
  %v307 = vrsqrt.pop %v306
  %v308 = vmul.f32 %v306, %v307
  %vm309 = vcmp.eq.f32.partialorder %v306, inf
  %v310 = vsel %vm309, %v306, %v308
  %vm311 = vcmp.eq.f32.partialorder %v306, 0.0
  %v312 = vand.u32 %v306, 2147483648
  %v313 = vsel %vm311, %v312, %v310
  %v314 = vsel %vm296, %v291, %v313
  %316 = vrot.lane.b32.xlu0 %v314, 8
  %v317 = vpop.permute.xlu0 %316
  %vm319 = vcmask 64512
  %v320 = vsel %vm319, %v314, %v317
  %321 = vrot.lane.b32.xlu0 %v314, 120
  %v322 = vpop.permute.xlu0 %321
  %v324 = vsel %vm319, %v322, %v314
  %v325 = vld [vmem:[%s3] sm:$0xff]
  %v326 = vmul.f32 %v324, %v325
  %v327 = vadd.f32 %v320, %v326
  %329 = vrot.lane.b32.xlu0 %v327, 16
  %v330 = vpop.permute.xlu0 %329
  %v332 = vsel %vm109, %v314, %v330
  %333 = vst.msk [vmem:[%s4] sm:$0xff] %vm183, %v332
  // Predicated region
  $region18: #{qz_given_xy_forward.1} parent=0 // pred_check
    _
  $region19: #{qz_given_xy_forward.1} parent=0 // pred_check_branch
    %335 = sbr.rel (0) target = $region21
  $region20: #{qz_given_xy_forward.1} parent=0 // pred_region
    _
  $region21: #{qz_given_xy_forward.1} parent=0 // pred_fallthru
    _
  // Predicated region
  $region22: #{qz_given_xy_forward.1} parent=0 // pred_check
    _
  $region23: #{qz_given_xy_forward.1} parent=0 // pred_check_branch
    %337 = sbr.rel (0) target = $region25
  $region24: #{qz_given_xy_forward.1} parent=0 // pred_region
    _
  $region25: #{qz_given_xy_forward.1} parent=0 // pred_fallthru
    _

</llo_original>
